<compile_context>
chip_gen: v7x
topology: tpu7x:2x2x1
jax: 0.10.0
libtpu: 0.0.40
codegen_flags: <defaults>
</compile_context>

<pallas_src>
import jax
import jax.numpy as jnp
import numpy as np
from jax.experimental import pallas as pl
from jax.experimental.pallas import tpu as pltpu


# ---------------------------------------------------------------------------
# Sinusoid table — identical to the PyTorch module's registered buffer.
# ---------------------------------------------------------------------------
def make_sinusoid_table(n_position: int, d_hid: int) -> jnp.ndarray:
    pos = np.arange(n_position, dtype=np.float64)[:, None]            # [P, 1]
    hid = np.arange(d_hid, dtype=np.int64)[None, :]                   # [1, D]
    angle = pos / np.power(10000.0, 2 * (hid // 2) / d_hid)           # [P, D]
    table = np.empty((n_position, d_hid), dtype=np.float64)
    table[:, 0::2] = np.sin(angle[:, 0::2])
    table[:, 1::2] = np.cos(angle[:, 1::2])
    return jnp.asarray(table, dtype=jnp.float32)                      # [P, D]


# ---------------------------------------------------------------------------
# Hardware-aware defaults.
# ---------------------------------------------------------------------------
def _round_up(x: int, m: int) -> int:
    return -(-x // m) * m


def _hw_params():
    """Returns (physical_vmem_bytes, num_tensorcores, default_tile_bytes)."""
    kind = ""
    try:
        kind = jax.devices()[0].device_kind.lower()
    except Exception:
        pass
    is_v7 = ("v7" in kind) or ("7x" in kind)

    # Physical VMEM per TensorCore (v7x has 64 MiB; v5e/v6e have 128 MiB).
    vmem = (64 << 20) if is_v7 else (128 << 20)
    try:
        info = pltpu.get_tpu_info()
        v = getattr(info, "vmem_capacity_bytes", None)
        if v:
            vmem = int(v)
    except Exception:
        pass

    num_cores = 2 if is_v7 else 1   # v7x: 2 TCs/chip -> keep >=2 grid steps.

    if is_v7:
        tile_bytes = 8 << 20   # ~3.2 TB/s HBM: bigger tiles amortize the ~0.35us/step cost
    elif "v6" in kind:
        tile_bytes = 6 << 20   # ~1.4 TB/s HBM, 128 MiB VMEM: ~86% roofline at >=4 MiB tiles
    elif "v5" in kind:
        tile_bytes = 2 << 20   # ~0.82 TB/s HBM: 2 MiB already near roofline
    else:
        tile_bytes = 4 << 20
    return vmem, num_cores, tile_bytes


# ---------------------------------------------------------------------------
# Tile selection (padded-VMEM aware).
# ---------------------------------------------------------------------------
def _choose_batch_tile(B: int, sublane: int, max_tb: int = 256) -> int:
    """Batch tile: a multiple of the packing sublane count dividing B (largest
    such divisor <= max_tb), or the whole batch if B is small / has no aligned
    divisor (block dim == array dim is always legal)."""
    if B <= sublane:
        return B
    best = 0
    tb = sublane
    while tb <= min(B, max_tb):
        if B % tb == 0:
            best = tb
        tb += sublane
    return best if best else B


def _choose_feat_tile(F: int, tb_pad: int, sublane: int, itemsize: int,
                      tile_bytes: int, vmem_budget: int) -> int:
    """Largest multiple of 128 dividing F such that the padded x tile fits the
    per-tile byte target AND the padded double-buffered footprint
    (2*x + 2*out + 2*pos) fits the VMEM budget.  Requires F % 128 == 0."""
    per_tf_x = tb_pad * itemsize                                  # x/out bytes per feature elem
    per_tf_total = (4 * tb_pad + 2 * sublane) * itemsize          # full double-buffered footprint
    limit = min(tile_bytes // (128 * per_tf_x),
                vmem_budget // (128 * per_tf_total))
    m = F // 128
    limit = max(1, min(m, limit))
    for k in range(limit, 0, -1):
        if m % k == 0:
            return k * 128
    return 128


def _ensure_two_steps(F: int, TF: int, B: int, TB: int):
    """v7x megacore load balance: make sure the grid has >=2 steps by splitting
    the feature axis (preferred, it is the outer 'parallel' axis) or batch."""
    if (F // TF) * (B // TB) >= 2:
        return TF, TB
    m = F // 128
    if m >= 2:
        for k in range(min(TF // 128, m // 2), 0, -1):
            if m % k == 0:
                return k * 128, TB
    for tb in range(min(TB, B // 2), 0, -1):
        if B % tb == 0:
            return TF, tb
    return TF, TB


def _choose_seq_tile(S: int, TB: int, D: int, sublane: int, itemsize: int,
                     tile_bytes: int, vmem_budget: int) -> int:
    """Fallback-path sequence tile: a multiple of 8 dividing S whose padded
    footprint fits the budgets; else the smallest 8-aligned divisor; else S."""
    if S <= 8:
        return S
    d_pad = _round_up(D, 128)

    def fits(ts):
        ts_pad = _round_up(ts, sublane)
        xo = TB * ts_pad * d_pad * itemsize           # one padded x (or out) buffer
        ps = ts_pad * d_pad * itemsize                # one padded pos buffer
        return xo <= tile_bytes and (4 * xo + 2 * ps) <= vmem_budget

    best, smallest = 0, 0
    for ts in range(8, S + 1, 8):
        if S % ts == 0:
            if smallest == 0:
                smallest = ts
            if fits(ts):
                best = ts
    if best:
        return best
    if smallest:
        return smallest
    return S


# ---------------------------------------------------------------------------
# Kernel body (shared by the 2-D lane-dense path and the 3-D fallback path).
# ---------------------------------------------------------------------------
def _pos_add_kernel(x_ref, pos_ref, o_ref):
    # x/o: (TB, TF) or (TB, TS, D); pos: (1, TF) or (1, TS, D) -> cheap
    # leading-dim / sublane broadcast, identical lane layout for all three.
    o_ref[...] = x_ref[...] + pos_ref[...]


# ---------------------------------------------------------------------------
# pallas_call wrappers.
# ---------------------------------------------------------------------------
def _pos_add_2d(x, pos, tile_bytes, vmem_budget, num_cores, donate_x):
    B, S, D = x.shape
    F = S * D
    itemsize = jnp.dtype(x.dtype).itemsize
    sublane = max(8, 32 // itemsize)          # 8 f32 / 16 bf16 / 32 int8-fp8

    x2 = x.reshape(B, F)                      # contiguous -> free reshape
    pos2 = pos.reshape(1, F)

    TB = _choose_batch_tile(B, sublane)
    tb_pad = _round_up(TB, sublane)
    TF = _choose_feat_tile(F, tb_pad, sublane, itemsize, tile_bytes, vmem_budget)
    if num_cores >= 2:
        TF, TB = _ensure_two_steps(F, TF, B, TB)
        tb_pad = _round_up(TB, sublane)

    # Padded, double-buffered VMEM footprint: 2*x + 2*out + 2*pos.
    xo_buf = tb_pad * TF * itemsize
    pos_buf = sublane * TF * itemsize         # (1, TF) block pads to a full sublane tile
    footprint = 4 * xo_buf + 2 * pos_buf
    vmem_limit = max(32 << 20, footprint + (2 << 20))
    # NOTE: pos could be single-buffered (pipeline_mode=pl.Buffered(1)) to shave
    # 2*pos_buf if VMEM ever gets tight; with correct accounting it is not.

    grid = (F // TF, B // TB)   # batch innermost: pos tile resident across batch steps
    out2 = pl.pallas_call(
        _pos_add_kernel,
        out_shape=jax.ShapeDtypeStruct((B, F), x.dtype),
        grid_spec=pltpu.PrefetchScalarGridSpec(
            num_scalar_prefetch=0,
            grid=grid,
            in_specs=[
                pl.BlockSpec((TB, TF), lambda f, b: (b, f)),   # x tile
                pl.BlockSpec((1, TF), lambda f, b: (0, f)),    # pos tile (batch-invariant)
            ],
            out_specs=pl.BlockSpec((TB, TF), lambda f, b: (b, f)),
        ),
        compiler_params=pltpu.CompilerParams(
            dimension_semantics=("parallel", "parallel"),
            vmem_limit_bytes=vmem_limit,
        ),
        input_output_aliases=({0: 0} if donate_x else {}),
    )(x2, pos2)
    return out2.reshape(B, S, D)


def _pos_add_3d(x, pos, tile_bytes, vmem_budget, num_cores, donate_x):
    # Robustness path for S*D % 128 != 0: keep (B, S, D) layout, tile along S
    # (second-to-last block dim must be 8-aligned or full), take D at full
    # extent.  Stores may be masked if D < 128 — acceptable off the hot path.
    del num_cores  # tiny-shape fallback; dual-TC split not worth the complexity here
    B, S, D = x.shape
    itemsize = jnp.dtype(x.dtype).itemsize
    sublane = max(8, 32 // itemsize)

    pos3 = pos.reshape(1, S, D)
    TB = _choose_batch_tile(B, sublane)
    TS = _choose_seq_tile(S, TB, D, sublane, itemsize, tile_bytes, vmem_budget)

    d_pad = _round_up(D, 128)
    ts_pad = _round_up(TS, sublane)
    xo_buf = TB * ts_pad * d_pad * itemsize
    pos_buf = ts_pad * d_pad * itemsize
    footprint = 4 * xo_buf + 2 * pos_buf
    vmem_limit = max(32 << 20, footprint + (2 << 20))

    grid = (S // TS, B // TB)   # batch innermost: pos tile resident across batch steps
    out = pl.pallas_call(
        _pos_add_kernel,
        out_shape=jax.ShapeDtypeStruct((B, S, D), x.dtype),
        grid_spec=pltpu.PrefetchScalarGridSpec(
            num_scalar_prefetch=0,
            grid=grid,
            in_specs=[
                pl.BlockSpec((TB, TS, D), lambda s, b: (b, s, 0)),  # x tile
                pl.BlockSpec((1, TS, D), lambda s, b: (0, s, 0)),   # pos tile
            ],
            out_specs=pl.BlockSpec((TB, TS, D), lambda s, b: (b, s, 0)),
        ),
        compiler_params=pltpu.CompilerParams(
            dimension_semantics=("parallel", "parallel"),
            vmem_limit_bytes=vmem_limit,
        ),
        input_output_aliases=({0: 0} if donate_x else {}),
    )(x, pos3)
    return out


def positional_encoding(x: jnp.ndarray, pos_table: jnp.ndarray, *,
                        tile_bytes: int | None = None,
                        vmem_budget: int | None = None,
                        donate_x: bool = False) -> jnp.ndarray:
    """x: [B, S, D]; pos_table: [n_position, D] (or already-sliced [S, D]).
    Returns x + pos_table[None, :S, :]."""
    B, S, D = x.shape
    if pos_table.ndim == 3:                     # accept the torch-style (1, P, D) buffer
        pos_table = pos_table.reshape(pos_table.shape[-2], pos_table.shape[-1])
    n_position, d_hid = pos_table.shape
    assert S <= n_position, f"seq_len {S} exceeds n_position {n_position}"
    assert d_hid == D, f"pos_table hidden dim {d_hid} != x hidden dim {D}"

    phys_vmem, num_cores, default_tile = _hw_params()
    if tile_bytes is None:
        tile_bytes = default_tile
    if vmem_budget is None:
        vmem_budget = (phys_vmem * 3) // 4      # headroom: ~48 MiB on v7x, ~96 MiB on v5e/v6e

    # Slice/cast only when needed (the module wrapper below caches this).
    # NOTE: the PyTorch module adds an fp32 buffer; casting to bf16 first can
    # differ from an fp32 add in the last bit for bf16 activations.
    if pos_table.shape[0] != S or pos_table.dtype != x.dtype:
        pos = pos_table[:S].astype(x.dtype)
    else:
        pos = pos_table

    if (S * D) % 128 == 0:
        return _pos_add_2d(x, pos, tile_bytes, vmem_budget, num_cores, donate_x)
    return _pos_add_3d(x, pos, tile_bytes, vmem_budget, num_cores, donate_x)
    # TODO(synk): for end-to-end wins, fuse this add into the adjacent embedding /
    # dropout / layernorm kernel — this op is pure HBM traffic (one read + one
    # write of the activation for a single VPU add).


# ---------------------------------------------------------------------------
# Module-style wrapper mirroring the PyTorch class (buffer + per-(S,dtype) cache).
# ---------------------------------------------------------------------------
class PostiionalEncoding:
    def __init__(self, d_hid: int, n_position: int = 200):
        self.pos_table = make_sinusoid_table(n_position, d_hid)   # fp32 buffer
        self._cache: dict = {}

    def __call__(self, x: jnp.ndarray) -> jnp.ndarray:
        S = x.shape[1]
        key = (S, jnp.dtype(x.dtype).name)
        pos = self._cache.get(key)
        if pos is None:
            pos = self.pos_table[:S].astype(x.dtype)
            self._cache[key] = pos
        return positional_encoding(x, pos)


if __name__ == "__main__":
    key = jax.random.PRNGKey(0)
    k0, k1, k2 = jax.random.split(key, 3)

    # Module-consistent small shape: batch=2, seq=8, hidden=32, n_position=200.
    B, S, D = 2, 8, 32
    enc = PostiionalEncoding(d_hid=D, n_position=200)
    x = jax.random.normal(k0, (B, S, D), dtype=jnp.float32)
    out = jax.block_until_ready(enc(x))
    ref = x + enc.pos_table[None, :S, :]
    np.testing.assert_allclose(np.asarray(out), np.asarray(ref), rtol=1e-6, atol=1e-6)

    # Exercise the multi-tile (feature, batch) grid path with a tiny tile budget.
    B2, S2, D2 = 4, 64, 64
    pos_table2 = make_sinusoid_table(200, D2)
    x2 = jax.random.normal(k1, (B2, S2, D2), dtype=jnp.float32)
    out2 = jax.block_until_ready(
        positional_encoding(x2, pos_table2, tile_bytes=32 * 1024))
    np.testing.assert_allclose(np.asarray(out2),
                               np.asarray(x2 + pos_table2[None, :S2, :]),
                               rtol=1e-6, atol=1e-6)

    # Exercise the non-lane-aligned fallback (S*D not a multiple of 128).
    B3, S3, D3 = 2, 8, 20
    pos_table3 = make_sinusoid_table(200, D3)
    x3 = jax.random.normal(k2, (B3, S3, D3), dtype=jnp.float32)
    out3 = jax.block_until_ready(positional_encoding(x3, pos_table3))
    np.testing.assert_allclose(np.asarray(out3),
                               np.asarray(x3 + pos_table3[None, :S3, :]),
                               rtol=1e-6, atol=1e-6)

    print("KERNEL_OK")
</pallas_src>

<mosaic_0001>
module attributes {stable_mosaic.version = 11 : i64} {
  func.func @_pos_add_kernel(%arg0: i32, %arg1: i32, %arg2: memref<2x256xf32, #tpu.memory_space<vmem>>, %arg3: memref<1x256xf32, #tpu.memory_space<vmem>>, %arg4: memref<2x256xf32, #tpu.memory_space<vmem>>) attributes {dimension_semantics = [#tpu.dimension_semantics<parallel>, #tpu.dimension_semantics<parallel>], iteration_bounds = array<i64: 1, 1>, scalar_prefetch = 0 : i64, scratch_operands = 0 : i64, tpu.core_type = #tpu.core_type<tc>, window_params = [{transform_indices = @transform_0, window_bounds = array<i64: 2, 256>}, {transform_indices = @transform_1, window_bounds = array<i64: 1, 256>}, {transform_indices = @transform_2, window_bounds = array<i64: 2, 256>}]} {
    %c0 = arith.constant 0 : index
    %c0_0 = arith.constant 0 : index
    %0 = vector.load %arg2[%c0, %c0_0] : memref<2x256xf32, #tpu.memory_space<vmem>>, vector<2x256xf32>
    %c0_1 = arith.constant 0 : index
    %c0_2 = arith.constant 0 : index
    %1 = vector.load %arg3[%c0_1, %c0_2] : memref<1x256xf32, #tpu.memory_space<vmem>>, vector<1x256xf32>
    %2 = vector.broadcast %1 : vector<1x256xf32> to vector<2x256xf32>
    %3 = arith.addf %0, %2 : vector<2x256xf32>
    %c0_3 = arith.constant 0 : index
    %c0_4 = arith.constant 0 : index
    %4 = vector.load %arg4[%c0_3, %c0_4] : memref<2x256xf32, #tpu.memory_space<vmem>>, vector<2x256xf32>
    tpu.vector_store %arg4[%c0_3, %c0_4], %3 {strides = array<i32>} : memref<2x256xf32, #tpu.memory_space<vmem>>, vector<2x256xf32>,
    return
  }
  func.func @transform_0(%arg0: i32, %arg1: i32) -> (i32, i32) {
    %c0_i32 = arith.constant 0 : i32
    return %arg1, %arg0 : i32, i32
  }
  func.func @transform_1(%arg0: i32, %arg1: i32) -> (i32, i32) {
    %c0_i32 = arith.constant 0 : i32
    %c0_i32_0 = arith.constant 0 : i32
    return %c0_i32, %arg0 : i32, i32
  }
  func.func @transform_2(%arg0: i32, %arg1: i32) -> (i32, i32) {
    %c0_i32 = arith.constant 0 : i32
    return %arg1, %arg0 : i32, i32
  }
}

</mosaic_0001>

<llo_original>
// kernel: tpu_custom_call.1
$region0: #{tpu_custom_call.1}
  #allocation0 [shape = 'u32[]', space=smem, size = 0x4, offset = 0x4, fixed_abs, tag = 'smem constant byte address 0x4 - core index']
  #allocation1 [shape = 'u32[144,128]{1,0:T(1,128)}', space=vmem, size = 0x12000, scoped, tag = 'internal scratch']
  %s0 = inlined_call_operand.hbm [shape: f32[2,256], index: 0, kind: input, shape index: {}]
  %s1 = inlined_call_operand.vmem [shape: f32[1,256], index: 1, kind: input, shape index: {}]
  %s2 = inlined_call_operand.hbm [shape: f32[2,256], index: 2, kind: output, shape index: {}]
  %s3 = sld [smem:[#allocation0]]
  $region22: #{tpu_custom_call.1} parent=0
    _
  %s5 = ssub.s32 1, %s3
  %s6 = scalar_select 0, %s5, %s3
  $region1: #{tpu_custom_call.1} parent=0
    #allocation2 [shape = 'u8[2048]{0}', space=vmem, size = 0x800, scoped, tag = 'input window, operand 0, single buffered']
    #allocation3 [shape = 's32[1]{0}', space=sflag, size = 0x4, scoped, tag = 'scoped memory for tpu_custom_call.1']
    #allocation4 [shape = 's32[1]{0}', space=sflag, size = 0x4, scoped, tag = 'scoped memory for tpu_custom_call.1']
    #allocation5 [shape = 'u8[2048]{0}', space=vmem, size = 0x800, scoped, tag = 'output window, operand 0, single buffered']
    %7 = vsyncpa [#allocation3], 0
    %8 = vsyncpa [#allocation4], 0
    // Predicated region
    $region2: #{tpu_custom_call.1} parent=1 // pred_check
      _
    $region3: #{tpu_custom_call.1} parent=1 // pred_check_branch
      %10 = sbr.rel (0) target = $region5
    $region4: #{tpu_custom_call.1} parent=1 // pred_region
      %s12 = ssub.s32 64, 64
      %13 = vsyncadd [#allocation3], %s12
      %s15 = sshll.u32 [#allocation2], 4
      %s16 = int_to_ptr.vmem [resolvable:$true] %s15
      %18 = dma.hbm_to_vmem [thread:$0]  %s0, 64, %s16, [#allocation3]
    $region5: #{tpu_custom_call.1} parent=1 // pred_fallthru
      _
    // Predicated region
    $region6: #{tpu_custom_call.1} parent=1 // pred_check
      _
    $region7: #{tpu_custom_call.1} parent=1 // pred_check_branch
      %20 = sbr.rel (0) target = $region9
    $region8: #{tpu_custom_call.1} parent=1 // pred_region
      _
    $region9: #{tpu_custom_call.1} parent=1 // pred_fallthru
      _
    // Predicated region
    $region10: #{tpu_custom_call.1} parent=1 // pred_check
      _
    $region11: #{tpu_custom_call.1} parent=1 // pred_check_branch
      %22 = sbr.rel (0) target = $region13
    $region12: #{tpu_custom_call.1} parent=1 // pred_region
      %23 = dma.done [#allocation3], 64
    $region13: #{tpu_custom_call.1} parent=1 // pred_fallthru
      _
    %v24 = vld [vmem:[#allocation2] sm:$0xf]
    %v25 = vld [vmem:[%s1] sm:$0x3]
    %v27 = vlaneseq
    %v28 = vshrl.u32 %v27, 7
    %v29 = vsub.s32 0, %v28
    %v30 = vrot.slane %v25, %v29
    %v31 = vlaneseq
    %v32 = vshrl.u32 %v31, 7
    %v33 = vsub.s32 1, %v32
    %v34 = vrot.slane %v25, %v33
    %v35 = vcombine.low %v30, %v34
    %v37 = vunpack.c.l.s4 1983009808
    %v38 = vunpack.c.0.s8 %v37
    %v39 = vlaneseq
    %v40 = vshrl.u32 %v39, 7
    %v41 = vsub.s32 %v38, %v40
    %v42 = vrot.slane %v35, %v41
    %v44 = vadd.f32 %v24, %v42
    %45 = vst [vmem:[#allocation5] sm:$0xf] %v44
    // Predicated region
    $region14: #{tpu_custom_call.1} parent=1 // pred_check
      _
    $region15: #{tpu_custom_call.1} parent=1 // pred_check_branch
      %47 = sbr.rel (0) target = $region17
    $region16: #{tpu_custom_call.1} parent=1 // pred_region
      %s49 = ssub.s32 64, 64
      %50 = vsyncadd [#allocation4], %s49
      %s52 = sshll.u32 [#allocation5], 4
      %s53 = int_to_ptr.vmem [resolvable:$true] %s52
      %55 = dma.vmem_to_hbm [thread:$0]  %s53, 64, %s2, [#allocation4]
    $region17: #{tpu_custom_call.1} parent=1 // pred_fallthru
      _
    // Predicated region
    $region18: #{tpu_custom_call.1} parent=1 // pred_check
      _
    $region19: #{tpu_custom_call.1} parent=1 // pred_check_branch
      %57 = sbr.rel (0) target = $region21
    $region20: #{tpu_custom_call.1} parent=1 // pred_region
      %58 = dma.done [#allocation4], 64
    $region21: #{tpu_custom_call.1} parent=1 // pred_fallthru
      _
    %59 = vsyncpa [#allocation3], 1
    %60 = vsyncpa [#allocation4], 1

</llo_original>
